<compile_context>
chip_gen: v7x
topology: tpu7x:2x2x1
jax: 0.10.0
libtpu: 0.0.40
codegen_flags: <defaults>
</compile_context>

<pallas_src>
import jax
import jax.numpy as jnp
from jax import lax
from jax.experimental import pallas as pl
from jax.experimental.pallas import tpu as pltpu


_EPS = 1e-10
_MAX_TILE = 512                      # hard cap per tiled axis (multiple of 128)
_VMEM_BUDGET = 20 * 1024 * 1024      # budget for the resident f32 buffers per step


def _round_up(x, m):
    return ((x + m - 1) // m) * m


def _tile_cap(c):
    # Resident f32 VMEM per grid step ~ (2*TN + 2*TK + TN) * C * 4 with TN == TK == cap
    # (double-buffered logits tile, double-buffered M tile, cached softmax scratch).
    cap = _VMEM_BUDGET // (5 * 4 * max(int(c), 1))
    cap = (cap // 128) * 128
    return max(128, min(_MAX_TILE, cap))


def _choose_tile(n, cap):
    """Return (tile, padded extent) for one tiled axis."""
    if n >= cap:
        t = cap                       # multi-tile path: multiple of 128
    else:
        t = _round_up(n, 8)           # single tile == full (padded) axis
    return t, _round_up(n, t)


def _forward_loss_kernel(out_ref, m_ref, counts_ref, mask_ref, part_ref, p_ref):
    # out_ref:    (TN, C) f32   current N-tile of logits
    # m_ref:      (TK, C) f32   current K-tile of M
    # counts_ref: (TK, 1) f32   label counts for this K-tile
    # mask_ref:   (1, TN) f32   1.0 for real sample columns, 0.0 for N padding
    # part_ref:   (8, 128) f32  per-N-tile partial (same value broadcast to all lanes)
    # p_ref:      (TN, C) f32   VMEM scratch caching softmax(out-tile)
    ki = pl.program_id(1)

    @pl.when(ki == 0)
    def _():
        # Softmax over classes: computed once per N-tile, reused for every K-tile.
        x = out_ref[...]
        mx = jnp.max(x, axis=1, keepdims=True)
        e = jnp.exp(x - mx)
        p_ref[...] = e * pl.reciprocal(jnp.sum(e, axis=1, keepdims=True), approx=False)
        part_ref[...] = jnp.zeros_like(part_ref)

    # M_tile @ p.T on the MXU (contract over the class axis), f32 accumulate.
    mp = lax.dot_general(
        m_ref[...], p_ref[...],
        dimension_numbers=(((1,), (1,)), ((), ())),
        preferred_element_type=jnp.float32,
    )                                                          # (TK, TN)

    log_prob = jnp.log(mp + _EPS)                              # EUP-bound work
    rowsum = jnp.sum(log_prob * mask_ref[...], axis=1, keepdims=True)   # (TK, 1)
    contrib = jnp.sum(counts_ref[...] * rowsum)                # rank-0 scalar

    # Lane-dense accumulation: broadcast the scalar over the whole resident block
    # (unmasked full-block store); the wrapper reads one lane per N-tile.
    part_ref[...] = part_ref[...] + contrib


@jax.jit
def new_forward_loss(out, M, z):
    """out: (N, C) f32, M: (K, C) f32, z: (N,) int -> scalar f32 loss."""
    out = out.astype(jnp.float32)
    M = M.astype(jnp.float32)
    z = z.astype(jnp.int32)

    N, C = out.shape
    K, _ = M.shape

    cap = _tile_cap(C)
    TN, N_pad = _choose_tile(N, cap)
    TK, K_pad = _choose_tile(K, cap)
    grid_n = N_pad // TN
    grid_k = K_pad // TK

    # Hoisted label counting: counts[k] = #{i : z[i] == k}. Padded K rows stay 0,
    # so they contribute nothing inside the kernel.
    counts = jnp.zeros((K_pad, 1), jnp.float32).at[z, 0].add(1.0)
    # Valid-column mask for N padding (padded columns must not enter rowsum).
    mask = (jnp.arange(N_pad) < N).astype(jnp.float32).reshape(1, N_pad)

    out_p = jnp.pad(out, ((0, N_pad - N), (0, 0)))
    M_p = jnp.pad(M, ((0, K_pad - K), (0, 0)))

    partials = pl.pallas_call(
        _forward_loss_kernel,
        out_shape=jax.ShapeDtypeStruct((grid_n * 8, 128), jnp.float32),
        grid_spec=pltpu.PrefetchScalarGridSpec(
            num_scalar_prefetch=0,
            grid=(grid_n, grid_k),
            in_specs=[
                pl.BlockSpec((TN, C), lambda ni, ki: (ni, 0)),   # logits tile
                pl.BlockSpec((TK, C), lambda ni, ki: (ki, 0)),   # M tile
                pl.BlockSpec((TK, 1), lambda ni, ki: (ki, 0)),   # counts tile
                pl.BlockSpec((1, TN), lambda ni, ki: (0, ni)),   # column-valid mask
            ],
            out_specs=pl.BlockSpec((8, 128), lambda ni, ki: (ni, 0)),
            scratch_shapes=[pltpu.VMEM((TN, C), jnp.float32)],
        ),
        compiler_params=pltpu.CompilerParams(
            dimension_semantics=("parallel", "arbitrary"),
        ),
    )(out_p, M_p, counts, mask)

    # Row 0 / lane 0 of each per-N-tile block carries that tile's accumulated value.
    return -jnp.sum(partials[::8, 0])


def _reference(out, M, z):
    # Pure-JAX reference mirroring the PyTorch forward literally.
    p = jax.nn.softmax(out.astype(jnp.float32), axis=1)
    log_prob = jnp.log(M.astype(jnp.float32) @ p.T + 1e-10)   # (K, N)
    gathered = log_prob[z.astype(jnp.int32)]                  # (N, N)
    return -jnp.sum(gathered)


if __name__ == "__main__":
    # Small shapes consistent with the module: N=8 samples, C=32 classes, M is (K=32, C=32).
    N, C, K = 8, 32, 32

    key = jax.random.PRNGKey(0)
    k_out, k_m, k_z = jax.random.split(key, 3)

    out = jax.random.normal(k_out, (N, C), dtype=jnp.float32)
    # Deterministic row-stochastic mixing matrix M (as the module's constructor arg).
    M_raw = jax.random.uniform(k_m, (K, C), dtype=jnp.float32, minval=0.0, maxval=1.0)
    M = M_raw / jnp.sum(M_raw, axis=1, keepdims=True)
    z = jax.random.randint(k_z, (N,), 0, K, dtype=jnp.int32)

    loss = new_forward_loss(out, M, z)
    jax.block_until_ready(loss)

    ref = _reference(out, M, z)
    assert jnp.allclose(loss, ref, rtol=1e-5, atol=1e-5), (loss, ref)

    print("KERNEL_OK")
</pallas_src>

<mosaic_0001>
module attributes {stable_mosaic.version = 11 : i64} {
  func.func @_forward_loss_kernel(%arg0: i32, %arg1: i32, %arg2: memref<8x32xf32, #tpu.memory_space<vmem>>, %arg3: memref<32x32xf32, #tpu.memory_space<vmem>>, %arg4: memref<32x1xf32, #tpu.memory_space<vmem>>, %arg5: memref<1x8xf32, #tpu.memory_space<vmem>>, %arg6: memref<8x128xf32, #tpu.memory_space<vmem>>, %arg7: memref<8x32xf32, #tpu.memory_space<vmem>>) attributes {dimension_semantics = [#tpu.dimension_semantics<parallel>, #tpu.dimension_semantics<arbitrary>], iteration_bounds = array<i64: 1, 1>, scalar_prefetch = 0 : i64, scratch_operands = 1 : i64, tpu.core_type = #tpu.core_type<tc>, window_params = [{transform_indices = @transform_0, window_bounds = array<i64: 8, 32>}, {transform_indices = @transform_1, window_bounds = array<i64: 32, 32>}, {transform_indices = @transform_2, window_bounds = array<i64: 32, 1>}, {transform_indices = @transform_3, window_bounds = array<i64: 1, 8>}, {transform_indices = @transform_4, window_bounds = array<i64: 8, 128>}]} {
    %c0_i32 = arith.constant 0 : i32
    %0 = arith.cmpi eq, %arg1, %c0_i32 : i32
    %1 = arith.extui %0 : i1 to i32
    %c0_i32_0 = arith.constant 0 : i32
    %2 = arith.cmpi ne, %1, %c0_i32_0 : i32
    scf.if %2 {
      %c0_15 = arith.constant 0 : index
      %c0_16 = arith.constant 0 : index
      %24 = vector.load %arg2[%c0_15, %c0_16] : memref<8x32xf32, #tpu.memory_space<vmem>>, vector<8x32xf32>
      %cst_17 = arith.constant dense<0xFF800000> : vector<8xf32>
      %25 = vector.multi_reduction <maximumf>, %24, %cst_17 [1] : vector<8x32xf32> to vector<8xf32>
      %26 = vector.shape_cast %25 : vector<8xf32> to vector<8x1xf32>
      %27 = vector.broadcast %26 : vector<8x1xf32> to vector<8x32xf32>
      %28 = arith.subf %24, %27 : vector<8x32xf32>
      %29 = math.exp %28 : vector<8x32xf32>
      %cst_18 = arith.constant dense<0.000000e+00> : vector<8xf32>
      %30 = vector.multi_reduction <add>, %29, %cst_18 [1] : vector<8x32xf32> to vector<8xf32>
      %31 = vector.shape_cast %30 : vector<8xf32> to vector<8x1xf32>
      %32 = tpu.reciprocal %31 : vector<8x1xf32> -> vector<8x1xf32>
      %33 = vector.broadcast %32 : vector<8x1xf32> to vector<8x32xf32>
      %34 = arith.mulf %29, %33 : vector<8x32xf32>
      %c0_19 = arith.constant 0 : index
      %c0_20 = arith.constant 0 : index
      %35 = vector.load %arg7[%c0_19, %c0_20] : memref<8x32xf32, #tpu.memory_space<vmem>>, vector<8x32xf32>
      tpu.vector_store %arg7[%c0_19, %c0_20], %34 {strides = array<i32>} : memref<8x32xf32, #tpu.memory_space<vmem>>, vector<8x32xf32>,
      %cst_21 = arith.constant 0.000000e+00 : f32
      %36 = vector.broadcast %cst_21 : f32 to vector<8x128xf32>
      %c0_22 = arith.constant 0 : index
      %c0_23 = arith.constant 0 : index
      %37 = vector.load %arg6[%c0_22, %c0_23] : memref<8x128xf32, #tpu.memory_space<vmem>>, vector<8x128xf32>
      tpu.vector_store %arg6[%c0_22, %c0_23], %36 {strides = array<i32>} : memref<8x128xf32, #tpu.memory_space<vmem>>, vector<8x128xf32>,
    } else {
    }
    %c0 = arith.constant 0 : index
    %c0_1 = arith.constant 0 : index
    %3 = vector.load %arg3[%c0, %c0_1] : memref<32x32xf32, #tpu.memory_space<vmem>>, vector<32x32xf32>
    %c0_2 = arith.constant 0 : index
    %c0_3 = arith.constant 0 : index
    %4 = vector.load %arg7[%c0_2, %c0_3] : memref<8x32xf32, #tpu.memory_space<vmem>>, vector<8x32xf32>
    %cst = arith.constant dense<0.000000e+00> : vector<32x8xf32>
    %5 = tpu.matmul %3, %4, %cst {dimension_numbers = #tpu.dot_dimension_numbers<[1], [1], [0], [0], [0, 0, 1, 0], [], []>} : vector<32x32xf32>, vector<8x32xf32>, vector<32x8xf32> -> vector<32x8xf32>
    %cst_4 = arith.constant 1.000000e-10 : f32
    %6 = vector.broadcast %cst_4 : f32 to vector<32x8xf32>
    %7 = arith.addf %5, %6 : vector<32x8xf32>
    %8 = math.log %7 : vector<32x8xf32>
    %c0_5 = arith.constant 0 : index
    %c0_6 = arith.constant 0 : index
    %9 = vector.load %arg5[%c0_5, %c0_6] : memref<1x8xf32, #tpu.memory_space<vmem>>, vector<1x8xf32>
    %10 = vector.broadcast %9 : vector<1x8xf32> to vector<32x8xf32>
    %11 = arith.mulf %8, %10 : vector<32x8xf32>
    %cst_7 = arith.constant dense<0.000000e+00> : vector<32xf32>
    %12 = vector.multi_reduction <add>, %11, %cst_7 [1] : vector<32x8xf32> to vector<32xf32>
    %13 = vector.shape_cast %12 : vector<32xf32> to vector<32x1xf32>
    %c0_8 = arith.constant 0 : index
    %c0_9 = arith.constant 0 : index
    %14 = vector.load %arg4[%c0_8, %c0_9] : memref<32x1xf32, #tpu.memory_space<vmem>>, vector<32x1xf32>
    %15 = arith.mulf %14, %13 : vector<32x1xf32>
    %16 = vector.shape_cast %15 : vector<32x1xf32> to vector<1x32x1xf32>
    %cst_10 = arith.constant dense<0.000000e+00> : vector<1xf32>
    %17 = vector.multi_reduction <add>, %16, %cst_10 [1, 2] : vector<1x32x1xf32> to vector<1xf32>
    %18 = vector.shape_cast %17 : vector<1xf32> to vector<1x1x1xf32>
    %19 = vector.extract %18[0, 0, 0] : f32 from vector<1x1x1xf32>
    %c0_11 = arith.constant 0 : index
    %c0_12 = arith.constant 0 : index
    %20 = vector.load %arg6[%c0_11, %c0_12] : memref<8x128xf32, #tpu.memory_space<vmem>>, vector<8x128xf32>
    %21 = vector.broadcast %19 : f32 to vector<8x128xf32>
    %22 = arith.addf %20, %21 : vector<8x128xf32>
    %c0_13 = arith.constant 0 : index
    %c0_14 = arith.constant 0 : index
    %23 = vector.load %arg6[%c0_13, %c0_14] : memref<8x128xf32, #tpu.memory_space<vmem>>, vector<8x128xf32>
    tpu.vector_store %arg6[%c0_13, %c0_14], %22 {strides = array<i32>} : memref<8x128xf32, #tpu.memory_space<vmem>>, vector<8x128xf32>,
    return
  }
  func.func @transform_0(%arg0: i32, %arg1: i32) -> (i32, i32) {
    %c0_i32 = arith.constant 0 : i32
    %c0_i32_0 = arith.constant 0 : i32
    return %arg0, %c0_i32 : i32, i32
  }
  func.func @transform_1(%arg0: i32, %arg1: i32) -> (i32, i32) {
    %c0_i32 = arith.constant 0 : i32
    %c0_i32_0 = arith.constant 0 : i32
    return %arg1, %c0_i32 : i32, i32
  }
  func.func @transform_2(%arg0: i32, %arg1: i32) -> (i32, i32) {
    %c0_i32 = arith.constant 0 : i32
    %c0_i32_0 = arith.constant 0 : i32
    return %arg1, %c0_i32 : i32, i32
  }
  func.func @transform_3(%arg0: i32, %arg1: i32) -> (i32, i32) {
    %c0_i32 = arith.constant 0 : i32
    %c0_i32_0 = arith.constant 0 : i32
    return %c0_i32, %arg0 : i32, i32
  }
  func.func @transform_4(%arg0: i32, %arg1: i32) -> (i32, i32) {
    %c0_i32 = arith.constant 0 : i32
    %c0_i32_0 = arith.constant 0 : i32
    return %arg0, %c0_i32 : i32, i32
  }
}

</mosaic_0001>

<llo_original>
// kernel: new_forward_loss.1
$region0: #{new_forward_loss.1}
  #allocation0 [shape = 'u32[]', space=smem, size = 0x4, offset = 0x4, fixed_abs, tag = 'smem constant byte address 0x4 - core index']
  #allocation1 [shape = 'u32[144,128]{1,0:T(1,128)}', space=vmem, size = 0x12000, scoped, tag = 'internal scratch']
  #allocation2 [shape = 'f32[8,32]{1,0:T(8,128)}', space=vmem, size = 0x1000, scoped, tag = 'scratch operand']
  %s0 = inlined_call_operand.vmem [shape: f32[8,32], index: 0, kind: input, shape index: {}]
  %s1 = inlined_call_operand.vmem [shape: f32[32,32], index: 1, kind: input, shape index: {}]
  %s2 = inlined_call_operand.vmem [shape: f32[32,1], index: 2, kind: input, shape index: {}]
  %s3 = inlined_call_operand.vmem [shape: f32[1,8], index: 3, kind: input, shape index: {}]
  %s4 = inlined_call_operand.vmem [shape: f32[8,128], index: 4, kind: output, shape index: {}]
  %s5 = sld [smem:[#allocation0]]
  $region30: #{new_forward_loss.1} parent=0
    _
  %s7 = ssub.s32 1, %s5
  %s8 = scalar_select 0, %s7, %s5
  // Predicated region
  $region2: #{new_forward_loss.1} parent=0 // pred_check
    _
  $region3: #{new_forward_loss.1} parent=0 // pred_check_branch
    %10 = sbr.rel (0) target = $region5
  $region4: #{new_forward_loss.1} parent=0 // pred_region
    _
  $region5: #{new_forward_loss.1} parent=0 // pred_fallthru
    _
  // Predicated region
  $region6: #{new_forward_loss.1} parent=0 // pred_check
    _
  $region7: #{new_forward_loss.1} parent=0 // pred_check_branch
    %12 = sbr.rel (0) target = $region9
  $region8: #{new_forward_loss.1} parent=0 // pred_region
    _
  $region9: #{new_forward_loss.1} parent=0 // pred_fallthru
    _
  // Predicated region
  $region10: #{new_forward_loss.1} parent=0 // pred_check
    _
  $region11: #{new_forward_loss.1} parent=0 // pred_check_branch
    %14 = sbr.rel (0) target = $region13
  $region12: #{new_forward_loss.1} parent=0 // pred_region
    _
  $region13: #{new_forward_loss.1} parent=0 // pred_fallthru
    _
  // Predicated region
  $region14: #{new_forward_loss.1} parent=0 // pred_check
    _
  $region15: #{new_forward_loss.1} parent=0 // pred_check_branch
    %16 = sbr.rel (0) target = $region17
  $region16: #{new_forward_loss.1} parent=0 // pred_region
    _
  $region17: #{new_forward_loss.1} parent=0 // pred_fallthru
    _
  %p17 = scmp.eq.s32.totalorder 0, 0
  // Predicated region
  $region18: #{new_forward_loss.1} parent=0 // pred_check
    %p18 = pneg %p17
  $region19: #{new_forward_loss.1} parent=0 // pred_check_branch
    %20 = sbr.rel (%p18) target = $region21
  $region20: #{new_forward_loss.1} parent=0 // pred_region
    %v21 = vld [vmem:[%s0] sm:$0xff]
    %vm22 = vcmask 261120
    %v23 = vsel %vm22, %v21, -inf
    %24 = vmax.xlane.f32.xlu0 %v23
    %v25 = vpop.xlane.xlu0 %24
    %v26 = vsub.f32 %v21, %v25
    %v27 = vmul.f32 %v26, 1.442695
    %v28 = vpow.pop %v27
    %v29 = vsel %vm22, %v28, 0.0
    %30 = vadd.xlane.f32.xlu0 %v29
    %v31 = vpop.xlane.xlu0 %30
    %v32 = vrcp.pop %v31
    %v33 = vmul.f32 %v28, %v32
    %34 = vst.msk [vmem:[#allocation2] sm:$0xff] %vm22, %v33
    %35 = vst [vmem:[%s4] sm:$0xff] 0.0
  $region21: #{new_forward_loss.1} parent=0 // pred_fallthru
    _
  %v36 = vld [vmem:[%s1] sm:$0xff]
  %v37 = vld [vmem:[%s1 + $0x8] sm:$0xff]
  %v38 = vld [vmem:[%s1 + $0x10] sm:$0xff]
  %v39 = vld [vmem:[%s1 + $0x18] sm:$0xff]
  %v40 = vld [vmem:[#allocation2] sm:$0xff]
  %vm41 = vcmask 261120
  %v43 = vsel %vm41, %v36, 0
  %v46 = vsel %vm41, %v37, 0
  %v49 = vsel %vm41, %v38, 0
  %v52 = vsel %vm41, %v39, 0
  %v55 = vsel %vm41, %v40, 0
  %57 = vmatprep.subr.mxu0 0.0
  %58 = vmatpush1.xpose.msra.mxu0 %v55
  %59 = vmatprep.subr.mxu0 0.0
  %60 = vmatpush1.xpose.msra.mxu0 0.0
  %61 = vmatprep.subr.mxu0 0.0
  %62 = vmatpush1.xpose.msra.mxu0 0.0
  %63 = vmatprep.subr.mxu0 0.0
  %64 = vmatpush1.xpose.msra.mxu0 0.0
  %65 = vmatprep.subr.mxu0 0.0
  %66 = vmatpush1.xpose.msra.mxu0 0.0
  %67 = vmatprep.subr.mxu0 0.0
  %68 = vmatpush1.xpose.msra.mxu0 0.0
  %69 = vmatprep.subr.mxu0 0.0
  %70 = vmatpush1.xpose.msra.mxu0 0.0
  %71 = vmatprep.subr.mxu0 0.0
  %72 = vmatpush1.xpose.msra.mxu0 0.0
  %73 = vmatprep.subr.mxu0 0.0
  %74 = vmatpush1.xpose.msra.mxu0 0.0
  %75 = vmatprep.subr.mxu0 0.0
  %76 = vmatpush1.xpose.msra.mxu0 0.0
  %77 = vmatprep.subr.mxu0 0.0
  %78 = vmatpush1.xpose.msra.mxu0 0.0
  %79 = vmatprep.subr.mxu0 0.0
  %80 = vmatpush1.xpose.msra.mxu0 0.0
  %81 = vmatprep.subr.mxu0 0.0
  %82 = vmatpush1.xpose.msra.mxu0 0.0
  %83 = vmatprep.subr.mxu0 0.0
  %84 = vmatpush1.xpose.msra.mxu0 0.0
  %85 = vmatprep.subr.mxu0 0.0
  %86 = vmatpush1.xpose.msra.mxu0 0.0
  %87 = vmatprep.subr.mxu0 0.0
  %88 = vmatpush1.xpose.msra.mxu0 0.0
  %89 = vmatprep.subr.mxu0 0.0
  %90 = vmatpush1.xpose.msra.mxu0 0.0
  %91 = vmatprep.subr.mxu0 0.0
  %92 = vmatpush1.xpose.msra.mxu0 0.0
  %93 = vmatprep.subr.mxu0 0.0
  %94 = vmatpush1.xpose.msra.mxu0 0.0
  %95 = vmatprep.subr.mxu0 0.0
  %96 = vmatpush1.xpose.msra.mxu0 0.0
  %97 = vmatprep.subr.mxu0 0.0
  %98 = vmatpush1.xpose.msra.mxu0 0.0
  %99 = vmatprep.subr.mxu0 0.0
  %100 = vmatpush1.xpose.msra.mxu0 0.0
  %101 = vmatprep.subr.mxu0 0.0
  %102 = vmatpush1.xpose.msra.mxu0 0.0
  %103 = vmatprep.subr.mxu0 0.0
  %104 = vmatpush1.xpose.msra.mxu0 0.0
  %105 = vmatprep.subr.mxu0 0.0
  %106 = vmatpush1.xpose.msra.mxu0 0.0
  %107 = vmatprep.subr.mxu0 0.0
  %108 = vmatpush1.xpose.msra.mxu0 0.0
  %109 = vmatprep.subr.mxu0 0.0
  %110 = vmatpush1.xpose.msra.mxu0 0.0
  %111 = vmatprep.subr.mxu0 0.0
  %112 = vmatpush1.xpose.msra.mxu0 0.0
  %113 = vmatprep.subr.mxu0 0.0
  %114 = vmatpush1.xpose.msra.mxu0 0.0
  %115 = vmatprep.subr.mxu0 0.0
  %116 = vmatpush1.xpose.msra.mxu0 0.0
  %117 = vmatprep.subr.mxu0 0.0
  %118 = vmatpush1.xpose.msra.mxu0 0.0
  %119 = vmatprep.subr.mxu0 0.0
  %120 = vmatpush1.xpose.msra.mxu0 0.0
  %121 = vmatprep.mubr.f32.mxu0 0.0
  %122 = vmatmul.mubr.f32.gmra.mrb[0].mxu0 %v43
  %v123 = vpop.f32.mrb[0].mxu0
  %v124 = vadd.f32 1e-10, %v123
  %v125 = vpop.f32.mrb[0].mxu0
  %126 = vmatprep.mubr.f32.mxu0 0.0
  %127 = vmatmul.mubr.f32.gmra.mrb[0].mxu0 %v46
  %v128 = vpop.f32.mrb[0].mxu0
  %v129 = vadd.f32 1e-10, %v128
  %v130 = vpop.f32.mrb[0].mxu0
  %131 = vmatprep.mubr.f32.mxu0 0.0
  %132 = vmatmul.mubr.f32.gmra.mrb[0].mxu0 %v49
  %v133 = vpop.f32.mrb[0].mxu0
  %v134 = vadd.f32 1e-10, %v133
  %v135 = vpop.f32.mrb[0].mxu0
  %136 = vmatprep.mubr.f32.mxu0 0.0
  %137 = vmatmul.mubr.f32.gmra.mrb[0].mxu0 %v52
  %v138 = vpop.f32.mrb[0].mxu0
  %v139 = vadd.f32 1e-10, %v138
  %v140 = vpop.f32.mrb[0].mxu0
  %141 = vdwg.mxu0
  %v142 = vlog2.pop %v124
  %v143 = vmul.f32 %v142, 0.6931472
  %v144 = vlog2.pop %v129
  %v145 = vmul.f32 %v144, 0.6931472
  %v146 = vlog2.pop %v134
  %v147 = vmul.f32 %v146, 0.6931472
  %v148 = vlog2.pop %v139
  %v149 = vmul.f32 %v148, 0.6931472
  %v150 = vld [vmem:[%s3] sm:$0x1]
  %v152 = vlaneseq
  %v153 = vshrl.u32 %v152, 7
  %v154 = vsub.s32 0, %v153
  %v155 = vrot.slane %v150, %v154
  %v157 = vmul.f32 %v143, %v155
  %v158 = vmul.f32 %v145, %v155
  %v159 = vmul.f32 %v147, %v155
  %v160 = vmul.f32 %v149, %v155
  %vm161 = vcmask 64512
  %v162 = vsel %vm161, %v157, 0.0
  %163 = vadd.xlane.f32.xlu0 %v162
  %v164 = vpop.xlane.xlu0 %163
  %v165 = vsel %vm161, %v158, 0.0
  %166 = vadd.xlane.f32.xlu0 %v165
  %v167 = vpop.xlane.xlu0 %166
  %v168 = vsel %vm161, %v159, 0.0
  %169 = vadd.xlane.f32.xlu0 %v168
  %v170 = vpop.xlane.xlu0 %169
  %v171 = vsel %vm161, %v160, 0.0
  %172 = vadd.xlane.f32.xlu0 %v171
  %v173 = vpop.xlane.xlu0 %172
  %v174 = vld [vmem:[%s2] sm:$0xff]
  %v175 = vld [vmem:[%s2 + $0x8] sm:$0xff]
  %v176 = vld [vmem:[%s2 + $0x10] sm:$0xff]
  %v177 = vld [vmem:[%s2 + $0x18] sm:$0xff]
  %v178 = vmul.f32 %v174, %v164
  %v179 = vmul.f32 %v175, %v167
  %v180 = vmul.f32 %v176, %v170
  %v181 = vmul.f32 %v177, %v173
  %vm182 = vcmask 7168
  %v183 = vsel %vm182, %v178, 0.0
  %v184 = vsel %vm182, %v179, 0.0
  %v185 = vadd.f32 %v183, %v184
  %v186 = vsel %vm182, %v180, 0.0
  %v187 = vadd.f32 %v185, %v186
  %v188 = vsel %vm182, %v181, 0.0
  %v189 = vadd.f32 %v187, %v188
  %190 = vadd.xlane.f32.xlu0 %v189
  %v191 = vpop.xlane.xlu0 %190
  %v192 = vrot.slane %v191, 4
  %v193 = vadd.f32 %v191, %v192
  %v194 = vrot.slane %v193, 2
  %v195 = vadd.f32 %v193, %v194
  %v196 = vrot.slane %v195, 1
  %v197 = vadd.f32 %v195, %v196
  %s198 = vtos %v197
  %v199 = vld [vmem:[%s4] sm:$0xff]
  %v200 = vstv %s198
  %v201 = vadd.f32 %v199, %v200
  %202 = vst [vmem:[%s4] sm:$0xff] %v201
  // Predicated region
  $region22: #{new_forward_loss.1} parent=0 // pred_check
    _
  $region23: #{new_forward_loss.1} parent=0 // pred_check_branch
    %204 = sbr.rel (0) target = $region25
  $region24: #{new_forward_loss.1} parent=0 // pred_region
    _
  $region25: #{new_forward_loss.1} parent=0 // pred_fallthru
    _
  // Predicated region
  $region26: #{new_forward_loss.1} parent=0 // pred_check
    _
  $region27: #{new_forward_loss.1} parent=0 // pred_check_branch
    %206 = sbr.rel (0) target = $region29
  $region28: #{new_forward_loss.1} parent=0 // pred_region
    _
  $region29: #{new_forward_loss.1} parent=0 // pred_fallthru
    _

</llo_original>
